<compile_context>
chip_gen: v5e
topology: v5e:2x2
jax: 0.10.0
libtpu: 0.0.40
codegen_flags: <defaults>
</compile_context>

<pallas_src>
import jax
import jax.numpy as jnp
from jax.experimental import pallas as pl
from jax.experimental.pallas import tpu as pltpu

LANES = 128
IN_FEATURES = 2
HIDDEN = 12
CLASSES = 4

# Flat parameter layout (single 1-D f32 SMEM array of 88 scalars):
#   w1[i, f] -> OFF_W1 + i*HIDDEN + f     (2*12 = 24)
#   b1[f]    -> OFF_B1 + f                (12)
#   w2[f, c] -> OFF_W2 + f*CLASSES + c    (12*4 = 48)
#   b2[c]    -> OFF_B2 + c                (4)
OFF_W1 = 0
OFF_B1 = OFF_W1 + IN_FEATURES * HIDDEN
OFF_W2 = OFF_B1 + HIDDEN
OFF_B2 = OFF_W2 + HIDDEN * CLASSES
N_PARAMS = OFF_B2 + CLASSES  # 88


def pack_params(w1, b1, w2, b2):
    return jnp.concatenate(
        [w1.reshape(-1), b1.reshape(-1), w2.reshape(-1), b2.reshape(-1)]
    ).astype(jnp.float32)


def quadrant_mlp_kernel(p_ref, x_ref, o_ref):
    # p_ref: (88,) f32 in SMEM (all weights/biases).
    # x_ref: (2, TR, 128) f32 VMEM tile  (feature, sublane-rows, lanes).
    # o_ref: (4, TR, 128) f32 VMEM tile  (class,   sublane-rows, lanes).
    x0 = x_ref[0]  # (TR, 128)
    x1 = x_ref[1]  # (TR, 128)

    # Class accumulators start at the output biases.
    acc = [jnp.zeros_like(x0) + p_ref[OFF_B2 + c] for c in range(CLASSES)]

    # Interleaved Linear(2,12)+ReLU and Linear(12,4): compute one hidden
    # activation at a time and immediately fold it into the 4 class
    # accumulators, so h_f never stays live.  All scalar-broadcast FMAs on the
    # VPU over dense (TR, 128) slabs.
    for f in range(HIDDEN):
        h = jnp.maximum(
            p_ref[OFF_W1 + 0 * HIDDEN + f] * x0
            + p_ref[OFF_W1 + 1 * HIDDEN + f] * x1
            + p_ref[OFF_B1 + f],
            0.0,
        )
        for c in range(CLASSES):
            acc[c] = acc[c] + p_ref[OFF_W2 + f * CLASSES + c] * h

    # Softmax over the 4 class slabs, fully unrolled, element-wise per lane
    # (no cross-lane reduce).  Exact reciprocal keeps the 1e-4 tolerance.
    m = jnp.maximum(jnp.maximum(acc[0], acc[1]), jnp.maximum(acc[2], acc[3]))
    e = [jnp.exp(a - m) for a in acc]
    denom = (e[0] + e[1]) + (e[2] + e[3])
    inv = 1.0 / denom
    for c in range(CLASSES):
        o_ref[c] = (e[c] * inv).astype(o_ref.dtype)


def _forward_lane_dense(xt, params, *, block_rows=32):
    """Feature-major entry point.

    xt: (2, n_rows, 128) f32 (batch already lane-dense).  Returns the class
    probabilities in the same lane-dense layout: (4, n_rows, 128).
    """
    _, n_rows, _ = xt.shape
    br = min(block_rows, n_rows)
    grid = (pl.cdiv(n_rows, br),)
    return pl.pallas_call(
        quadrant_mlp_kernel,
        out_shape=jax.ShapeDtypeStruct((CLASSES, n_rows, LANES), jnp.float32),
        grid=grid,
        in_specs=[
            pl.BlockSpec(memory_space=pltpu.MemorySpace.SMEM),        # params (88,)
            pl.BlockSpec((IN_FEATURES, br, LANES), lambda i: (0, i, 0)),
        ],
        out_specs=pl.BlockSpec((CLASSES, br, LANES), lambda i: (0, i, 0)),
        compiler_params=pltpu.CompilerParams(
            dimension_semantics=("parallel",),  # shards batch across TCs on v7x
        ),
    )(params, xt)


def quadrant_net_forward(x, params, *, block_rows=32):
    """PyTorch-compatible wrapper: x (N, 2) f32 -> softmax probs (N, 4) f32.

    The pad+transpose here (and the final transpose back) are the only wrapper
    relayout passes; callers that already keep data feature-major can use
    _forward_lane_dense directly and skip both.
    """
    n = x.shape[0]
    n_rows = pl.cdiv(n, LANES)
    n_pad = n_rows * LANES  # pad batch only to a multiple of 128 lanes

    # (N, 2) -> (2, n_rows, 128); zero-padded columns compute softmax(bias)
    # in isolated lanes and are sliced off below.
    xt = jnp.pad(x.astype(jnp.float32), ((0, n_pad - n), (0, 0)))
    xt = xt.T.reshape(IN_FEATURES, n_rows, LANES)

    out = _forward_lane_dense(xt, params, block_rows=block_rows)
    return out.reshape(CLASSES, n_pad)[:, :n].T


def init_params(key):
    """Deterministic init mimicking nn.Linear defaults (uniform +/- 1/sqrt(fan_in))."""
    k1, k2, k3, k4 = jax.random.split(key, 4)
    bound1 = 1.0 / jnp.sqrt(2.0)
    bound2 = 1.0 / jnp.sqrt(12.0)
    w1 = jax.random.uniform(k1, (IN_FEATURES, HIDDEN), jnp.float32, -bound1, bound1)
    b1 = jax.random.uniform(k2, (HIDDEN,), jnp.float32, -bound1, bound1)
    w2 = jax.random.uniform(k3, (HIDDEN, CLASSES), jnp.float32, -bound2, bound2)
    b2 = jax.random.uniform(k4, (CLASSES,), jnp.float32, -bound2, bound2)
    return w1, b1, w2, b2


def reference_forward(x, w1, b1, w2, b2):
    h = jnp.maximum(x @ w1 + b1, 0.0)
    logits = h @ w2 + b2
    return jax.nn.softmax(logits, axis=1)


if __name__ == "__main__":
    key = jax.random.PRNGKey(0)
    pkey, xkey = jax.random.split(key)
    w1, b1, w2, b2 = init_params(pkey)
    params = pack_params(w1, b1, w2, b2)

    # Small batch of 2-D points (quadrant classification input).
    x = jax.random.normal(xkey, (8, 2), dtype=jnp.float32)

    out = quadrant_net_forward(x, params)
    out = jax.block_until_ready(out)

    ref = reference_forward(x, w1, b1, w2, b2)
    assert out.shape == (8, CLASSES)
    assert jnp.allclose(out, ref, atol=1e-5, rtol=1e-5)
    assert jnp.allclose(jnp.sum(out, axis=1), 1.0, atol=1e-5)

    print("KERNEL_OK")
</pallas_src>

<mosaic_0001>
module attributes {stable_mosaic.version = 11 : i64} {
  func.func @quadrant_mlp_kernel(%arg0: i32, %arg1: memref<88xf32, #tpu.memory_space<smem>>, %arg2: memref<2x1x128xf32, #tpu.memory_space<vmem>>, %arg3: memref<4x1x128xf32, #tpu.memory_space<vmem>>) attributes {dimension_semantics = [#tpu.dimension_semantics<parallel>], iteration_bounds = array<i64: 1>, scalar_prefetch = 0 : i64, scratch_operands = 0 : i64, tpu.core_type = #tpu.core_type<tc>, window_params = [{transform_indices = @transform_0, window_bounds = array<i64: 88>}, {transform_indices = @transform_1, window_bounds = array<i64: 2, 1, 128>}, {transform_indices = @transform_2, window_bounds = array<i64: 4, 1, 128>}]} {
    %c0 = arith.constant 0 : index
    %c0_0 = arith.constant 0 : index
    %c0_1 = arith.constant 0 : index
    %0 = vector.load %arg2[%c0, %c0_0, %c0_1] : memref<2x1x128xf32, #tpu.memory_space<vmem>>, vector<1x1x128xf32>
    %1 = vector.shape_cast %0 : vector<1x1x128xf32> to vector<1x128xf32>
    %c1 = arith.constant 1 : index
    %c0_2 = arith.constant 0 : index
    %c0_3 = arith.constant 0 : index
    %2 = vector.load %arg2[%c1, %c0_2, %c0_3] : memref<2x1x128xf32, #tpu.memory_space<vmem>>, vector<1x1x128xf32>
    %3 = vector.shape_cast %2 : vector<1x1x128xf32> to vector<1x128xf32>
    %cst = arith.constant 0.000000e+00 : f32
    %4 = vector.broadcast %cst : f32 to vector<1x128xf32>
    %c84 = arith.constant 84 : index
    %5 = memref.load %arg1[%c84] : memref<88xf32, #tpu.memory_space<smem>>
    %6 = vector.broadcast %5 : f32 to vector<1x128xf32>
    %7 = arith.addf %4, %6 : vector<1x128xf32>
    %cst_4 = arith.constant 0.000000e+00 : f32
    %8 = vector.broadcast %cst_4 : f32 to vector<1x128xf32>
    %c85 = arith.constant 85 : index
    %9 = memref.load %arg1[%c85] : memref<88xf32, #tpu.memory_space<smem>>
    %10 = vector.broadcast %9 : f32 to vector<1x128xf32>
    %11 = arith.addf %8, %10 : vector<1x128xf32>
    %cst_5 = arith.constant 0.000000e+00 : f32
    %12 = vector.broadcast %cst_5 : f32 to vector<1x128xf32>
    %c86 = arith.constant 86 : index
    %13 = memref.load %arg1[%c86] : memref<88xf32, #tpu.memory_space<smem>>
    %14 = vector.broadcast %13 : f32 to vector<1x128xf32>
    %15 = arith.addf %12, %14 : vector<1x128xf32>
    %cst_6 = arith.constant 0.000000e+00 : f32
    %16 = vector.broadcast %cst_6 : f32 to vector<1x128xf32>
    %c87 = arith.constant 87 : index
    %17 = memref.load %arg1[%c87] : memref<88xf32, #tpu.memory_space<smem>>
    %18 = vector.broadcast %17 : f32 to vector<1x128xf32>
    %19 = arith.addf %16, %18 : vector<1x128xf32>
    %c0_7 = arith.constant 0 : index
    %20 = memref.load %arg1[%c0_7] : memref<88xf32, #tpu.memory_space<smem>>
    %21 = vector.broadcast %20 : f32 to vector<1x128xf32>
    %22 = arith.mulf %21, %1 : vector<1x128xf32>
    %c12 = arith.constant 12 : index
    %23 = memref.load %arg1[%c12] : memref<88xf32, #tpu.memory_space<smem>>
    %24 = vector.broadcast %23 : f32 to vector<1x128xf32>
    %25 = arith.mulf %24, %3 : vector<1x128xf32>
    %26 = arith.addf %22, %25 : vector<1x128xf32>
    %c24 = arith.constant 24 : index
    %27 = memref.load %arg1[%c24] : memref<88xf32, #tpu.memory_space<smem>>
    %28 = vector.broadcast %27 : f32 to vector<1x128xf32>
    %29 = arith.addf %26, %28 : vector<1x128xf32>
    %cst_8 = arith.constant 0.000000e+00 : f32
    %30 = vector.broadcast %cst_8 : f32 to vector<1x128xf32>
    %31 = arith.maximumf %29, %30 : vector<1x128xf32>
    %c36 = arith.constant 36 : index
    %32 = memref.load %arg1[%c36] : memref<88xf32, #tpu.memory_space<smem>>
    %33 = vector.broadcast %32 : f32 to vector<1x128xf32>
    %34 = arith.mulf %33, %31 : vector<1x128xf32>
    %35 = arith.addf %7, %34 : vector<1x128xf32>
    %c37 = arith.constant 37 : index
    %36 = memref.load %arg1[%c37] : memref<88xf32, #tpu.memory_space<smem>>
    %37 = vector.broadcast %36 : f32 to vector<1x128xf32>
    %38 = arith.mulf %37, %31 : vector<1x128xf32>
    %39 = arith.addf %11, %38 : vector<1x128xf32>
    %c38 = arith.constant 38 : index
    %40 = memref.load %arg1[%c38] : memref<88xf32, #tpu.memory_space<smem>>
    %41 = vector.broadcast %40 : f32 to vector<1x128xf32>
    %42 = arith.mulf %41, %31 : vector<1x128xf32>
    %43 = arith.addf %15, %42 : vector<1x128xf32>
    %c39 = arith.constant 39 : index
    %44 = memref.load %arg1[%c39] : memref<88xf32, #tpu.memory_space<smem>>
    %45 = vector.broadcast %44 : f32 to vector<1x128xf32>
    %46 = arith.mulf %45, %31 : vector<1x128xf32>
    %47 = arith.addf %19, %46 : vector<1x128xf32>
    %c1_9 = arith.constant 1 : index
    %48 = memref.load %arg1[%c1_9] : memref<88xf32, #tpu.memory_space<smem>>
    %49 = vector.broadcast %48 : f32 to vector<1x128xf32>
    %50 = arith.mulf %49, %1 : vector<1x128xf32>
    %c13 = arith.constant 13 : index
    %51 = memref.load %arg1[%c13] : memref<88xf32, #tpu.memory_space<smem>>
    %52 = vector.broadcast %51 : f32 to vector<1x128xf32>
    %53 = arith.mulf %52, %3 : vector<1x128xf32>
    %54 = arith.addf %50, %53 : vector<1x128xf32>
    %c25 = arith.constant 25 : index
    %55 = memref.load %arg1[%c25] : memref<88xf32, #tpu.memory_space<smem>>
    %56 = vector.broadcast %55 : f32 to vector<1x128xf32>
    %57 = arith.addf %54, %56 : vector<1x128xf32>
    %cst_10 = arith.constant 0.000000e+00 : f32
    %58 = vector.broadcast %cst_10 : f32 to vector<1x128xf32>
    %59 = arith.maximumf %57, %58 : vector<1x128xf32>
    %c40 = arith.constant 40 : index
    %60 = memref.load %arg1[%c40] : memref<88xf32, #tpu.memory_space<smem>>
    %61 = vector.broadcast %60 : f32 to vector<1x128xf32>
    %62 = arith.mulf %61, %59 : vector<1x128xf32>
    %63 = arith.addf %35, %62 : vector<1x128xf32>
    %c41 = arith.constant 41 : index
    %64 = memref.load %arg1[%c41] : memref<88xf32, #tpu.memory_space<smem>>
    %65 = vector.broadcast %64 : f32 to vector<1x128xf32>
    %66 = arith.mulf %65, %59 : vector<1x128xf32>
    %67 = arith.addf %39, %66 : vector<1x128xf32>
    %c42 = arith.constant 42 : index
    %68 = memref.load %arg1[%c42] : memref<88xf32, #tpu.memory_space<smem>>
    %69 = vector.broadcast %68 : f32 to vector<1x128xf32>
    %70 = arith.mulf %69, %59 : vector<1x128xf32>
    %71 = arith.addf %43, %70 : vector<1x128xf32>
    %c43 = arith.constant 43 : index
    %72 = memref.load %arg1[%c43] : memref<88xf32, #tpu.memory_space<smem>>
    %73 = vector.broadcast %72 : f32 to vector<1x128xf32>
    %74 = arith.mulf %73, %59 : vector<1x128xf32>
    %75 = arith.addf %47, %74 : vector<1x128xf32>
    %c2 = arith.constant 2 : index
    %76 = memref.load %arg1[%c2] : memref<88xf32, #tpu.memory_space<smem>>
    %77 = vector.broadcast %76 : f32 to vector<1x128xf32>
    %78 = arith.mulf %77, %1 : vector<1x128xf32>
    %c14 = arith.constant 14 : index
    %79 = memref.load %arg1[%c14] : memref<88xf32, #tpu.memory_space<smem>>
    %80 = vector.broadcast %79 : f32 to vector<1x128xf32>
    %81 = arith.mulf %80, %3 : vector<1x128xf32>
    %82 = arith.addf %78, %81 : vector<1x128xf32>
    %c26 = arith.constant 26 : index
    %83 = memref.load %arg1[%c26] : memref<88xf32, #tpu.memory_space<smem>>
    %84 = vector.broadcast %83 : f32 to vector<1x128xf32>
    %85 = arith.addf %82, %84 : vector<1x128xf32>
    %cst_11 = arith.constant 0.000000e+00 : f32
    %86 = vector.broadcast %cst_11 : f32 to vector<1x128xf32>
    %87 = arith.maximumf %85, %86 : vector<1x128xf32>
    %c44 = arith.constant 44 : index
    %88 = memref.load %arg1[%c44] : memref<88xf32, #tpu.memory_space<smem>>
    %89 = vector.broadcast %88 : f32 to vector<1x128xf32>
    %90 = arith.mulf %89, %87 : vector<1x128xf32>
    %91 = arith.addf %63, %90 : vector<1x128xf32>
    %c45 = arith.constant 45 : index
    %92 = memref.load %arg1[%c45] : memref<88xf32, #tpu.memory_space<smem>>
    %93 = vector.broadcast %92 : f32 to vector<1x128xf32>
    %94 = arith.mulf %93, %87 : vector<1x128xf32>
    %95 = arith.addf %67, %94 : vector<1x128xf32>
    %c46 = arith.constant 46 : index
    %96 = memref.load %arg1[%c46] : memref<88xf32, #tpu.memory_space<smem>>
    %97 = vector.broadcast %96 : f32 to vector<1x128xf32>
    %98 = arith.mulf %97, %87 : vector<1x128xf32>
    %99 = arith.addf %71, %98 : vector<1x128xf32>
    %c47 = arith.constant 47 : index
    %100 = memref.load %arg1[%c47] : memref<88xf32, #tpu.memory_space<smem>>
    %101 = vector.broadcast %100 : f32 to vector<1x128xf32>
    %102 = arith.mulf %101, %87 : vector<1x128xf32>
    %103 = arith.addf %75, %102 : vector<1x128xf32>
    %c3 = arith.constant 3 : index
    %104 = memref.load %arg1[%c3] : memref<88xf32, #tpu.memory_space<smem>>
    %105 = vector.broadcast %104 : f32 to vector<1x128xf32>
    %106 = arith.mulf %105, %1 : vector<1x128xf32>
    %c15 = arith.constant 15 : index
    %107 = memref.load %arg1[%c15] : memref<88xf32, #tpu.memory_space<smem>>
    %108 = vector.broadcast %107 : f32 to vector<1x128xf32>
    %109 = arith.mulf %108, %3 : vector<1x128xf32>
    %110 = arith.addf %106, %109 : vector<1x128xf32>
    %c27 = arith.constant 27 : index
    %111 = memref.load %arg1[%c27] : memref<88xf32, #tpu.memory_space<smem>>
    %112 = vector.broadcast %111 : f32 to vector<1x128xf32>
    %113 = arith.addf %110, %112 : vector<1x128xf32>
    %cst_12 = arith.constant 0.000000e+00 : f32
    %114 = vector.broadcast %cst_12 : f32 to vector<1x128xf32>
    %115 = arith.maximumf %113, %114 : vector<1x128xf32>
    %c48 = arith.constant 48 : index
    %116 = memref.load %arg1[%c48] : memref<88xf32, #tpu.memory_space<smem>>
    %117 = vector.broadcast %116 : f32 to vector<1x128xf32>
    %118 = arith.mulf %117, %115 : vector<1x128xf32>
    %119 = arith.addf %91, %118 : vector<1x128xf32>
    %c49 = arith.constant 49 : index
    %120 = memref.load %arg1[%c49] : memref<88xf32, #tpu.memory_space<smem>>
    %121 = vector.broadcast %120 : f32 to vector<1x128xf32>
    %122 = arith.mulf %121, %115 : vector<1x128xf32>
    %123 = arith.addf %95, %122 : vector<1x128xf32>
    %c50 = arith.constant 50 : index
    %124 = memref.load %arg1[%c50] : memref<88xf32, #tpu.memory_space<smem>>
    %125 = vector.broadcast %124 : f32 to vector<1x128xf32>
    %126 = arith.mulf %125, %115 : vector<1x128xf32>
    %127 = arith.addf %99, %126 : vector<1x128xf32>
    %c51 = arith.constant 51 : index
    %128 = memref.load %arg1[%c51] : memref<88xf32, #tpu.memory_space<smem>>
    %129 = vector.broadcast %128 : f32 to vector<1x128xf32>
    %130 = arith.mulf %129, %115 : vector<1x128xf32>
    %131 = arith.addf %103, %130 : vector<1x128xf32>
    %c4 = arith.constant 4 : index
    %132 = memref.load %arg1[%c4] : memref<88xf32, #tpu.memory_space<smem>>
    %133 = vector.broadcast %132 : f32 to vector<1x128xf32>
    %134 = arith.mulf %133, %1 : vector<1x128xf32>
    %c16 = arith.constant 16 : index
    %135 = memref.load %arg1[%c16] : memref<88xf32, #tpu.memory_space<smem>>
    %136 = vector.broadcast %135 : f32 to vector<1x128xf32>
    %137 = arith.mulf %136, %3 : vector<1x128xf32>
    %138 = arith.addf %134, %137 : vector<1x128xf32>
    %c28 = arith.constant 28 : index
    %139 = memref.load %arg1[%c28] : memref<88xf32, #tpu.memory_space<smem>>
    %140 = vector.broadcast %139 : f32 to vector<1x128xf32>
    %141 = arith.addf %138, %140 : vector<1x128xf32>
    %cst_13 = arith.constant 0.000000e+00 : f32
    %142 = vector.broadcast %cst_13 : f32 to vector<1x128xf32>
    %143 = arith.maximumf %141, %142 : vector<1x128xf32>
    %c52 = arith.constant 52 : index
    %144 = memref.load %arg1[%c52] : memref<88xf32, #tpu.memory_space<smem>>
    %145 = vector.broadcast %144 : f32 to vector<1x128xf32>
    %146 = arith.mulf %145, %143 : vector<1x128xf32>
    %147 = arith.addf %119, %146 : vector<1x128xf32>
    %c53 = arith.constant 53 : index
    %148 = memref.load %arg1[%c53] : memref<88xf32, #tpu.memory_space<smem>>
    %149 = vector.broadcast %148 : f32 to vector<1x128xf32>
    %150 = arith.mulf %149, %143 : vector<1x128xf32>
    %151 = arith.addf %123, %150 : vector<1x128xf32>
    %c54 = arith.constant 54 : index
    %152 = memref.load %arg1[%c54] : memref<88xf32, #tpu.memory_space<smem>>
    %153 = vector.broadcast %152 : f32 to vector<1x128xf32>
    %154 = arith.mulf %153, %143 : vector<1x128xf32>
    %155 = arith.addf %127, %154 : vector<1x128xf32>
    %c55 = arith.constant 55 : index
    %156 = memref.load %arg1[%c55] : memref<88xf32, #tpu.memory_space<smem>>
    %157 = vector.broadcast %156 : f32 to vector<1x128xf32>
    %158 = arith.mulf %157, %143 : vector<1x128xf32>
    %159 = arith.addf %131, %158 : vector<1x128xf32>
    %c5 = arith.constant 5 : index
    %160 = memref.load %arg1[%c5] : memref<88xf32, #tpu.memory_space<smem>>
    %161 = vector.broadcast %160 : f32 to vector<1x128xf32>
    %162 = arith.mulf %161, %1 : vector<1x128xf32>
    %c17 = arith.constant 17 : index
    %163 = memref.load %arg1[%c17] : memref<88xf32, #tpu.memory_space<smem>>
    %164 = vector.broadcast %163 : f32 to vector<1x128xf32>
    %165 = arith.mulf %164, %3 : vector<1x128xf32>
    %166 = arith.addf %162, %165 : vector<1x128xf32>
    %c29 = arith.constant 29 : index
    %167 = memref.load %arg1[%c29] : memref<88xf32, #tpu.memory_space<smem>>
    %168 = vector.broadcast %167 : f32 to vector<1x128xf32>
    %169 = arith.addf %166, %168 : vector<1x128xf32>
    %cst_14 = arith.constant 0.000000e+00 : f32
    %170 = vector.broadcast %cst_14 : f32 to vector<1x128xf32>
    %171 = arith.maximumf %169, %170 : vector<1x128xf32>
    %c56 = arith.constant 56 : index
    %172 = memref.load %arg1[%c56] : memref<88xf32, #tpu.memory_space<smem>>
    %173 = vector.broadcast %172 : f32 to vector<1x128xf32>
    %174 = arith.mulf %173, %171 : vector<1x128xf32>
    %175 = arith.addf %147, %174 : vector<1x128xf32>
    %c57 = arith.constant 57 : index
    %176 = memref.load %arg1[%c57] : memref<88xf32, #tpu.memory_space<smem>>
    %177 = vector.broadcast %176 : f32 to vector<1x128xf32>
    %178 = arith.mulf %177, %171 : vector<1x128xf32>
    %179 = arith.addf %151, %178 : vector<1x128xf32>
    %c58 = arith.constant 58 : index
    %180 = memref.load %arg1[%c58] : memref<88xf32, #tpu.memory_space<smem>>
    %181 = vector.broadcast %180 : f32 to vector<1x128xf32>
    %182 = arith.mulf %181, %171 : vector<1x128xf32>
    %183 = arith.addf %155, %182 : vector<1x128xf32>
    %c59 = arith.constant 59 : index
    %184 = memref.load %arg1[%c59] : memref<88xf32, #tpu.memory_space<smem>>
    %185 = vector.broadcast %184 : f32 to vector<1x128xf32>
    %186 = arith.mulf %185, %171 : vector<1x128xf32>
    %187 = arith.addf %159, %186 : vector<1x128xf32>
    %c6 = arith.constant 6 : index
    %188 = memref.load %arg1[%c6] : memref<88xf32, #tpu.memory_space<smem>>
    %189 = vector.broadcast %188 : f32 to vector<1x128xf32>
    %190 = arith.mulf %189, %1 : vector<1x128xf32>
    %c18 = arith.constant 18 : index
    %191 = memref.load %arg1[%c18] : memref<88xf32, #tpu.memory_space<smem>>
    %192 = vector.broadcast %191 : f32 to vector<1x128xf32>
    %193 = arith.mulf %192, %3 : vector<1x128xf32>
    %194 = arith.addf %190, %193 : vector<1x128xf32>
    %c30 = arith.constant 30 : index
    %195 = memref.load %arg1[%c30] : memref<88xf32, #tpu.memory_space<smem>>
    %196 = vector.broadcast %195 : f32 to vector<1x128xf32>
    %197 = arith.addf %194, %196 : vector<1x128xf32>
    %cst_15 = arith.constant 0.000000e+00 : f32
    %198 = vector.broadcast %cst_15 : f32 to vector<1x128xf32>
    %199 = arith.maximumf %197, %198 : vector<1x128xf32>
    %c60 = arith.constant 60 : index
    %200 = memref.load %arg1[%c60] : memref<88xf32, #tpu.memory_space<smem>>
    %201 = vector.broadcast %200 : f32 to vector<1x128xf32>
    %202 = arith.mulf %201, %199 : vector<1x128xf32>
    %203 = arith.addf %175, %202 : vector<1x128xf32>
    %c61 = arith.constant 61 : index
    %204 = memref.load %arg1[%c61] : memref<88xf32, #tpu.memory_space<smem>>
    %205 = vector.broadcast %204 : f32 to vector<1x128xf32>
    %206 = arith.mulf %205, %199 : vector<1x128xf32>
    %207 = arith.addf %179, %206 : vector<1x128xf32>
    %c62 = arith.constant 62 : index
    %208 = memref.load %arg1[%c62] : memref<88xf32, #tpu.memory_space<smem>>
    %209 = vector.broadcast %208 : f32 to vector<1x128xf32>
    %210 = arith.mulf %209, %199 : vector<1x128xf32>
    %211 = arith.addf %183, %210 : vector<1x128xf32>
    %c63 = arith.constant 63 : index
    %212 = memref.load %arg1[%c63] : memref<88xf32, #tpu.memory_space<smem>>
    %213 = vector.broadcast %212 : f32 to vector<1x128xf32>
    %214 = arith.mulf %213, %199 : vector<1x128xf32>
    %215 = arith.addf %187, %214 : vector<1x128xf32>
    %c7 = arith.constant 7 : index
    %216 = memref.load %arg1[%c7] : memref<88xf32, #tpu.memory_space<smem>>
    %217 = vector.broadcast %216 : f32 to vector<1x128xf32>
    %218 = arith.mulf %217, %1 : vector<1x128xf32>
    %c19 = arith.constant 19 : index
    %219 = memref.load %arg1[%c19] : memref<88xf32, #tpu.memory_space<smem>>
    %220 = vector.broadcast %219 : f32 to vector<1x128xf32>
    %221 = arith.mulf %220, %3 : vector<1x128xf32>
    %222 = arith.addf %218, %221 : vector<1x128xf32>
    %c31 = arith.constant 31 : index
    %223 = memref.load %arg1[%c31] : memref<88xf32, #tpu.memory_space<smem>>
    %224 = vector.broadcast %223 : f32 to vector<1x128xf32>
    %225 = arith.addf %222, %224 : vector<1x128xf32>
    %cst_16 = arith.constant 0.000000e+00 : f32
    %226 = vector.broadcast %cst_16 : f32 to vector<1x128xf32>
    %227 = arith.maximumf %225, %226 : vector<1x128xf32>
    %c64 = arith.constant 64 : index
    %228 = memref.load %arg1[%c64] : memref<88xf32, #tpu.memory_space<smem>>
    %229 = vector.broadcast %228 : f32 to vector<1x128xf32>
    %230 = arith.mulf %229, %227 : vector<1x128xf32>
    %231 = arith.addf %203, %230 : vector<1x128xf32>
    %c65 = arith.constant 65 : index
    %232 = memref.load %arg1[%c65] : memref<88xf32, #tpu.memory_space<smem>>
    %233 = vector.broadcast %232 : f32 to vector<1x128xf32>
    %234 = arith.mulf %233, %227 : vector<1x128xf32>
    %235 = arith.addf %207, %234 : vector<1x128xf32>
    %c66 = arith.constant 66 : index
    %236 = memref.load %arg1[%c66] : memref<88xf32, #tpu.memory_space<smem>>
    %237 = vector.broadcast %236 : f32 to vector<1x128xf32>
    %238 = arith.mulf %237, %227 : vector<1x128xf32>
    %239 = arith.addf %211, %238 : vector<1x128xf32>
    %c67 = arith.constant 67 : index
    %240 = memref.load %arg1[%c67] : memref<88xf32, #tpu.memory_space<smem>>
    %241 = vector.broadcast %240 : f32 to vector<1x128xf32>
    %242 = arith.mulf %241, %227 : vector<1x128xf32>
    %243 = arith.addf %215, %242 : vector<1x128xf32>
    %c8 = arith.constant 8 : index
    %244 = memref.load %arg1[%c8] : memref<88xf32, #tpu.memory_space<smem>>
    %245 = vector.broadcast %244 : f32 to vector<1x128xf32>
    %246 = arith.mulf %245, %1 : vector<1x128xf32>
    %c20 = arith.constant 20 : index
    %247 = memref.load %arg1[%c20] : memref<88xf32, #tpu.memory_space<smem>>
    %248 = vector.broadcast %247 : f32 to vector<1x128xf32>
    %249 = arith.mulf %248, %3 : vector<1x128xf32>
    %250 = arith.addf %246, %249 : vector<1x128xf32>
    %c32 = arith.constant 32 : index
    %251 = memref.load %arg1[%c32] : memref<88xf32, #tpu.memory_space<smem>>
    %252 = vector.broadcast %251 : f32 to vector<1x128xf32>
    %253 = arith.addf %250, %252 : vector<1x128xf32>
    %cst_17 = arith.constant 0.000000e+00 : f32
    %254 = vector.broadcast %cst_17 : f32 to vector<1x128xf32>
    %255 = arith.maximumf %253, %254 : vector<1x128xf32>
    %c68 = arith.constant 68 : index
    %256 = memref.load %arg1[%c68] : memref<88xf32, #tpu.memory_space<smem>>
    %257 = vector.broadcast %256 : f32 to vector<1x128xf32>
    %258 = arith.mulf %257, %255 : vector<1x128xf32>
    %259 = arith.addf %231, %258 : vector<1x128xf32>
    %c69 = arith.constant 69 : index
    %260 = memref.load %arg1[%c69] : memref<88xf32, #tpu.memory_space<smem>>
    %261 = vector.broadcast %260 : f32 to vector<1x128xf32>
    %262 = arith.mulf %261, %255 : vector<1x128xf32>
    %263 = arith.addf %235, %262 : vector<1x128xf32>
    %c70 = arith.constant 70 : index
    %264 = memref.load %arg1[%c70] : memref<88xf32, #tpu.memory_space<smem>>
    %265 = vector.broadcast %264 : f32 to vector<1x128xf32>
    %266 = arith.mulf %265, %255 : vector<1x128xf32>
    %267 = arith.addf %239, %266 : vector<1x128xf32>
    %c71 = arith.constant 71 : index
    %268 = memref.load %arg1[%c71] : memref<88xf32, #tpu.memory_space<smem>>
    %269 = vector.broadcast %268 : f32 to vector<1x128xf32>
    %270 = arith.mulf %269, %255 : vector<1x128xf32>
    %271 = arith.addf %243, %270 : vector<1x128xf32>
    %c9 = arith.constant 9 : index
    %272 = memref.load %arg1[%c9] : memref<88xf32, #tpu.memory_space<smem>>
    %273 = vector.broadcast %272 : f32 to vector<1x128xf32>
    %274 = arith.mulf %273, %1 : vector<1x128xf32>
    %c21 = arith.constant 21 : index
    %275 = memref.load %arg1[%c21] : memref<88xf32, #tpu.memory_space<smem>>
    %276 = vector.broadcast %275 : f32 to vector<1x128xf32>
    %277 = arith.mulf %276, %3 : vector<1x128xf32>
    %278 = arith.addf %274, %277 : vector<1x128xf32>
    %c33 = arith.constant 33 : index
    %279 = memref.load %arg1[%c33] : memref<88xf32, #tpu.memory_space<smem>>
    %280 = vector.broadcast %279 : f32 to vector<1x128xf32>
    %281 = arith.addf %278, %280 : vector<1x128xf32>
    %cst_18 = arith.constant 0.000000e+00 : f32
    %282 = vector.broadcast %cst_18 : f32 to vector<1x128xf32>
    %283 = arith.maximumf %281, %282 : vector<1x128xf32>
    %c72 = arith.constant 72 : index
    %284 = memref.load %arg1[%c72] : memref<88xf32, #tpu.memory_space<smem>>
    %285 = vector.broadcast %284 : f32 to vector<1x128xf32>
    %286 = arith.mulf %285, %283 : vector<1x128xf32>
    %287 = arith.addf %259, %286 : vector<1x128xf32>
    %c73 = arith.constant 73 : index
    %288 = memref.load %arg1[%c73] : memref<88xf32, #tpu.memory_space<smem>>
    %289 = vector.broadcast %288 : f32 to vector<1x128xf32>
    %290 = arith.mulf %289, %283 : vector<1x128xf32>
    %291 = arith.addf %263, %290 : vector<1x128xf32>
    %c74 = arith.constant 74 : index
    %292 = memref.load %arg1[%c74] : memref<88xf32, #tpu.memory_space<smem>>
    %293 = vector.broadcast %292 : f32 to vector<1x128xf32>
    %294 = arith.mulf %293, %283 : vector<1x128xf32>
    %295 = arith.addf %267, %294 : vector<1x128xf32>
    %c75 = arith.constant 75 : index
    %296 = memref.load %arg1[%c75] : memref<88xf32, #tpu.memory_space<smem>>
    %297 = vector.broadcast %296 : f32 to vector<1x128xf32>
    %298 = arith.mulf %297, %283 : vector<1x128xf32>
    %299 = arith.addf %271, %298 : vector<1x128xf32>
    %c10 = arith.constant 10 : index
    %300 = memref.load %arg1[%c10] : memref<88xf32, #tpu.memory_space<smem>>
    %301 = vector.broadcast %300 : f32 to vector<1x128xf32>
    %302 = arith.mulf %301, %1 : vector<1x128xf32>
    %c22 = arith.constant 22 : index
    %303 = memref.load %arg1[%c22] : memref<88xf32, #tpu.memory_space<smem>>
    %304 = vector.broadcast %303 : f32 to vector<1x128xf32>
    %305 = arith.mulf %304, %3 : vector<1x128xf32>
    %306 = arith.addf %302, %305 : vector<1x128xf32>
    %c34 = arith.constant 34 : index
    %307 = memref.load %arg1[%c34] : memref<88xf32, #tpu.memory_space<smem>>
    %308 = vector.broadcast %307 : f32 to vector<1x128xf32>
    %309 = arith.addf %306, %308 : vector<1x128xf32>
    %cst_19 = arith.constant 0.000000e+00 : f32
    %310 = vector.broadcast %cst_19 : f32 to vector<1x128xf32>
    %311 = arith.maximumf %309, %310 : vector<1x128xf32>
    %c76 = arith.constant 76 : index
    %312 = memref.load %arg1[%c76] : memref<88xf32, #tpu.memory_space<smem>>
    %313 = vector.broadcast %312 : f32 to vector<1x128xf32>
    %314 = arith.mulf %313, %311 : vector<1x128xf32>
    %315 = arith.addf %287, %314 : vector<1x128xf32>
    %c77 = arith.constant 77 : index
    %316 = memref.load %arg1[%c77] : memref<88xf32, #tpu.memory_space<smem>>
    %317 = vector.broadcast %316 : f32 to vector<1x128xf32>
    %318 = arith.mulf %317, %311 : vector<1x128xf32>
    %319 = arith.addf %291, %318 : vector<1x128xf32>
    %c78 = arith.constant 78 : index
    %320 = memref.load %arg1[%c78] : memref<88xf32, #tpu.memory_space<smem>>
    %321 = vector.broadcast %320 : f32 to vector<1x128xf32>
    %322 = arith.mulf %321, %311 : vector<1x128xf32>
    %323 = arith.addf %295, %322 : vector<1x128xf32>
    %c79 = arith.constant 79 : index
    %324 = memref.load %arg1[%c79] : memref<88xf32, #tpu.memory_space<smem>>
    %325 = vector.broadcast %324 : f32 to vector<1x128xf32>
    %326 = arith.mulf %325, %311 : vector<1x128xf32>
    %327 = arith.addf %299, %326 : vector<1x128xf32>
    %c11 = arith.constant 11 : index
    %328 = memref.load %arg1[%c11] : memref<88xf32, #tpu.memory_space<smem>>
    %329 = vector.broadcast %328 : f32 to vector<1x128xf32>
    %330 = arith.mulf %329, %1 : vector<1x128xf32>
    %c23 = arith.constant 23 : index
    %331 = memref.load %arg1[%c23] : memref<88xf32, #tpu.memory_space<smem>>
    %332 = vector.broadcast %331 : f32 to vector<1x128xf32>
    %333 = arith.mulf %332, %3 : vector<1x128xf32>
    %334 = arith.addf %330, %333 : vector<1x128xf32>
    %c35 = arith.constant 35 : index
    %335 = memref.load %arg1[%c35] : memref<88xf32, #tpu.memory_space<smem>>
    %336 = vector.broadcast %335 : f32 to vector<1x128xf32>
    %337 = arith.addf %334, %336 : vector<1x128xf32>
    %cst_20 = arith.constant 0.000000e+00 : f32
    %338 = vector.broadcast %cst_20 : f32 to vector<1x128xf32>
    %339 = arith.maximumf %337, %338 : vector<1x128xf32>
    %c80 = arith.constant 80 : index
    %340 = memref.load %arg1[%c80] : memref<88xf32, #tpu.memory_space<smem>>
    %341 = vector.broadcast %340 : f32 to vector<1x128xf32>
    %342 = arith.mulf %341, %339 : vector<1x128xf32>
    %343 = arith.addf %315, %342 : vector<1x128xf32>
    %c81 = arith.constant 81 : index
    %344 = memref.load %arg1[%c81] : memref<88xf32, #tpu.memory_space<smem>>
    %345 = vector.broadcast %344 : f32 to vector<1x128xf32>
    %346 = arith.mulf %345, %339 : vector<1x128xf32>
    %347 = arith.addf %319, %346 : vector<1x128xf32>
    %c82 = arith.constant 82 : index
    %348 = memref.load %arg1[%c82] : memref<88xf32, #tpu.memory_space<smem>>
    %349 = vector.broadcast %348 : f32 to vector<1x128xf32>
    %350 = arith.mulf %349, %339 : vector<1x128xf32>
    %351 = arith.addf %323, %350 : vector<1x128xf32>
    %c83 = arith.constant 83 : index
    %352 = memref.load %arg1[%c83] : memref<88xf32, #tpu.memory_space<smem>>
    %353 = vector.broadcast %352 : f32 to vector<1x128xf32>
    %354 = arith.mulf %353, %339 : vector<1x128xf32>
    %355 = arith.addf %327, %354 : vector<1x128xf32>
    %356 = arith.maximumf %343, %347 : vector<1x128xf32>
    %357 = arith.maximumf %351, %355 : vector<1x128xf32>
    %358 = arith.maximumf %356, %357 : vector<1x128xf32>
    %359 = arith.subf %343, %358 : vector<1x128xf32>
    %360 = math.exp %359 : vector<1x128xf32>
    %361 = arith.subf %347, %358 : vector<1x128xf32>
    %362 = math.exp %361 : vector<1x128xf32>
    %363 = arith.subf %351, %358 : vector<1x128xf32>
    %364 = math.exp %363 : vector<1x128xf32>
    %365 = arith.subf %355, %358 : vector<1x128xf32>
    %366 = math.exp %365 : vector<1x128xf32>
    %367 = arith.addf %360, %362 : vector<1x128xf32>
    %368 = arith.addf %364, %366 : vector<1x128xf32>
    %369 = arith.addf %367, %368 : vector<1x128xf32>
    %cst_21 = arith.constant 1.000000e+00 : f32
    %370 = vector.broadcast %cst_21 : f32 to vector<1x128xf32>
    %371 = arith.divf %370, %369 : vector<1x128xf32>
    %372 = arith.mulf %360, %371 : vector<1x128xf32>
    %c0_22 = arith.constant 0 : index
    %c0_23 = arith.constant 0 : index
    %c0_24 = arith.constant 0 : index
    %373 = vector.load %arg3[%c0_22, %c0_23, %c0_24] : memref<4x1x128xf32, #tpu.memory_space<vmem>>, vector<1x1x128xf32>
    %374 = vector.shape_cast %373 : vector<1x1x128xf32> to vector<1x128xf32>
    %375 = vector.shape_cast %372 : vector<1x128xf32> to vector<1x1x128xf32>
    tpu.vector_store %arg3[%c0_22, %c0_23, %c0_24], %375 {strides = array<i32>} : memref<4x1x128xf32, #tpu.memory_space<vmem>>, vector<1x1x128xf32>,
    %376 = arith.mulf %362, %371 : vector<1x128xf32>
    %c1_25 = arith.constant 1 : index
    %c0_26 = arith.constant 0 : index
    %c0_27 = arith.constant 0 : index
    %377 = vector.load %arg3[%c1_25, %c0_26, %c0_27] : memref<4x1x128xf32, #tpu.memory_space<vmem>>, vector<1x1x128xf32>
    %378 = vector.shape_cast %377 : vector<1x1x128xf32> to vector<1x128xf32>
    %379 = vector.shape_cast %376 : vector<1x128xf32> to vector<1x1x128xf32>
    tpu.vector_store %arg3[%c1_25, %c0_26, %c0_27], %379 {strides = array<i32>} : memref<4x1x128xf32, #tpu.memory_space<vmem>>, vector<1x1x128xf32>,
    %380 = arith.mulf %364, %371 : vector<1x128xf32>
    %c2_28 = arith.constant 2 : index
    %c0_29 = arith.constant 0 : index
    %c0_30 = arith.constant 0 : index
    %381 = vector.load %arg3[%c2_28, %c0_29, %c0_30] : memref<4x1x128xf32, #tpu.memory_space<vmem>>, vector<1x1x128xf32>
    %382 = vector.shape_cast %381 : vector<1x1x128xf32> to vector<1x128xf32>
    %383 = vector.shape_cast %380 : vector<1x128xf32> to vector<1x1x128xf32>
    tpu.vector_store %arg3[%c2_28, %c0_29, %c0_30], %383 {strides = array<i32>} : memref<4x1x128xf32, #tpu.memory_space<vmem>>, vector<1x1x128xf32>,
    %384 = arith.mulf %366, %371 : vector<1x128xf32>
    %c3_31 = arith.constant 3 : index
    %c0_32 = arith.constant 0 : index
    %c0_33 = arith.constant 0 : index
    %385 = vector.load %arg3[%c3_31, %c0_32, %c0_33] : memref<4x1x128xf32, #tpu.memory_space<vmem>>, vector<1x1x128xf32>
    %386 = vector.shape_cast %385 : vector<1x1x128xf32> to vector<1x128xf32>
    %387 = vector.shape_cast %384 : vector<1x128xf32> to vector<1x1x128xf32>
    tpu.vector_store %arg3[%c3_31, %c0_32, %c0_33], %387 {strides = array<i32>} : memref<4x1x128xf32, #tpu.memory_space<vmem>>, vector<1x1x128xf32>,
    return
  }
  func.func @transform_0(%arg0: i32) -> i32 {
    %c0_i32 = arith.constant 0 : i32
    %c0_i32_0 = arith.constant 0 : i32
    return %c0_i32 : i32
  }
  func.func @transform_1(%arg0: i32) -> (i32, i32, i32) {
    %c0_i32 = arith.constant 0 : i32
    %c0_i32_0 = arith.constant 0 : i32
    %c0_i32_1 = arith.constant 0 : i32
    return %c0_i32, %arg0, %c0_i32_0 : i32, i32, i32
  }
  func.func @transform_2(%arg0: i32) -> (i32, i32, i32) {
    %c0_i32 = arith.constant 0 : i32
    %c0_i32_0 = arith.constant 0 : i32
    %c0_i32_1 = arith.constant 0 : i32
    return %c0_i32, %arg0, %c0_i32_0 : i32, i32, i32
  }
}

</mosaic_0001>

<llo_original>
// kernel: tpu_custom_call.1
$region0: #{tpu_custom_call.1}
  #allocation0 [shape = 'u32[]', space=smem, size = 0x4, offset = 0x4, fixed_abs, tag = 'smem constant byte address 0x4 - core index']
  #allocation1 [shape = 'u32[72,128]{1,0:T(1,128)}', space=vmem, size = 0x9000, scoped, tag = 'internal scratch']
  %s0 = inlined_call_operand.hbm [shape: f32[88], index: 0, kind: input, shape index: {}]
  %s1 = inlined_call_operand.hbm [shape: f32[2,1,128], index: 1, kind: input, shape index: {}]
  %s2 = inlined_call_operand.hbm [shape: f32[4,1,128], index: 2, kind: output, shape index: {}]
  %s3 = sld [smem:[#allocation0]]
  $region26: #{tpu_custom_call.1} parent=0
    _
  %s5 = ssub.s32 1, %s3
  %s6 = scalar_select 0, %s5, %s3
  $region1: #{tpu_custom_call.1} parent=0
    #allocation2 [shape = 'u8[512]{0}', space=smem, size = 0x200, scoped, tag = 'input window, operand 0, single buffered']
    #allocation3 [shape = 's32[1]{0}', space=sflag, size = 0x4, scoped, tag = 'scoped memory for tpu_custom_call.1']
    #allocation4 [shape = 's32[1]{0}', space=sflag, size = 0x4, scoped, tag = 'scoped memory for tpu_custom_call.1']
    #allocation5 [shape = 's32[1]{0}', space=sflag, size = 0x4, scoped, tag = 'scoped memory for tpu_custom_call.1']
    #allocation6 [shape = 'u8[1024]{0}', space=vmem, size = 0x400, scoped, tag = 'input window, operand 1, single buffered']
    #allocation7 [shape = 'u8[2048]{0}', space=vmem, size = 0x800, scoped, tag = 'output window, operand 0, single buffered']
    %7 = vsyncpa [#allocation5], 0
    %8 = vsyncpa [#allocation3], 0
    %9 = vsyncpa [#allocation4], 0
    // Predicated region
    $region2: #{tpu_custom_call.1} parent=1 // pred_check
      _
    $region3: #{tpu_custom_call.1} parent=1 // pred_check_branch
      %11 = sbr.rel (0) target = $region5
    $region4: #{tpu_custom_call.1} parent=1 // pred_region
      %13 = vsyncadd [#allocation5], 0
      %s15 = sshll.u32 %s0, 4
      %s16 = int_to_ptr.hbm [resolvable:$true] %s15
      %18 = dma.hbm_to_smem %s16, 16, [#allocation2], [#allocation5]
    $region5: #{tpu_custom_call.1} parent=1 // pred_fallthru
      _
    // Predicated region
    $region6: #{tpu_custom_call.1} parent=1 // pred_check
      _
    $region7: #{tpu_custom_call.1} parent=1 // pred_check_branch
      %20 = sbr.rel (0) target = $region9
    $region8: #{tpu_custom_call.1} parent=1 // pred_region
      %22 = vsyncadd [#allocation3], 0
      %s23 = sshll.u32 %s1, 4
      %s24 = int_to_ptr.hbm [resolvable:$true] %s23
      %s25 = sshll.u32 [#allocation6], 4
      %s26 = int_to_ptr.vmem [resolvable:$true] %s25
      %31 = dma.hbm_to_vmem [thread:$0]  %s24, 32, %s26, [#allocation3], 16, 16, 1
    $region9: #{tpu_custom_call.1} parent=1 // pred_fallthru
      _
    // Predicated region
    $region10: #{tpu_custom_call.1} parent=1 // pred_check
      _
    $region11: #{tpu_custom_call.1} parent=1 // pred_check_branch
      %33 = sbr.rel (0) target = $region13
    $region12: #{tpu_custom_call.1} parent=1 // pred_region
      %35 = dma.done [#allocation5], 16
    $region13: #{tpu_custom_call.1} parent=1 // pred_fallthru
      _
    // Predicated region
    $region14: #{tpu_custom_call.1} parent=1 // pred_check
      _
    $region15: #{tpu_custom_call.1} parent=1 // pred_check_branch
      %37 = sbr.rel (0) target = $region17
    $region16: #{tpu_custom_call.1} parent=1 // pred_region
      %39 = dma.done [#allocation3], 32
    $region17: #{tpu_custom_call.1} parent=1 // pred_fallthru
      _
    %40 = sfence
    %v41 = vld [vmem:[#allocation6] sm:$0x1]
    %s42 = scalar_lea.vmem [#allocation6], 1
    %v43 = vld [vmem:[%s42] sm:$0x1]
    %s44 = sld [smem:[#allocation2 + $0x54]]
    %v45 = vstv %s44
    %v46 = vadd.f32 %v45, 0.0
    %s47 = sld [smem:[#allocation2 + $0x55]]
    %v48 = vstv %s47
    %v49 = vadd.f32 %v48, 0.0
    %s50 = sld [smem:[#allocation2 + $0x56]]
    %v51 = vstv %s50
    %v52 = vadd.f32 %v51, 0.0
    %s53 = sld [smem:[#allocation2 + $0x57]]
    %v54 = vstv %s53
    %v55 = vadd.f32 %v54, 0.0
    %s56 = sld [smem:[#allocation2]]
    %v57 = vstv %s56
    %v58 = vmul.f32 %v57, %v41
    %s59 = sld [smem:[#allocation2 + $0xc]]
    %v60 = vstv %s59
    %v61 = vmul.f32 %v60, %v43
    %v62 = vadd.f32 %v58, %v61
    %s63 = sld [smem:[#allocation2 + $0x18]]
    %v64 = vstv %s63
    %v65 = vadd.f32 %v62, %v64
    %v66 = vmax.f32 %v65, 0.0
    %s67 = sld [smem:[#allocation2 + $0x24]]
    %v68 = vstv %s67
    %v69 = vmul.f32 %v68, %v66
    %v70 = vadd.f32 %v46, %v69
    %s71 = sld [smem:[#allocation2 + $0x25]]
    %v72 = vstv %s71
    %v73 = vmul.f32 %v72, %v66
    %v74 = vadd.f32 %v49, %v73
    %s75 = sld [smem:[#allocation2 + $0x26]]
    %v76 = vstv %s75
    %v77 = vmul.f32 %v76, %v66
    %v78 = vadd.f32 %v52, %v77
    %s79 = sld [smem:[#allocation2 + $0x27]]
    %v80 = vstv %s79
    %v81 = vmul.f32 %v80, %v66
    %v82 = vadd.f32 %v55, %v81
    %s83 = sld [smem:[#allocation2 + $0x1]]
    %v84 = vstv %s83
    %v85 = vmul.f32 %v84, %v41
    %s86 = sld [smem:[#allocation2 + $0xd]]
    %v87 = vstv %s86
    %v88 = vmul.f32 %v87, %v43
    %v89 = vadd.f32 %v85, %v88
    %s90 = sld [smem:[#allocation2 + $0x19]]
    %v91 = vstv %s90
    %v92 = vadd.f32 %v89, %v91
    %v93 = vmax.f32 %v92, 0.0
    %s94 = sld [smem:[#allocation2 + $0x28]]
    %v95 = vstv %s94
    %v96 = vmul.f32 %v95, %v93
    %v97 = vadd.f32 %v70, %v96
    %s98 = sld [smem:[#allocation2 + $0x29]]
    %v99 = vstv %s98
    %v100 = vmul.f32 %v99, %v93
    %v101 = vadd.f32 %v74, %v100
    %s102 = sld [smem:[#allocation2 + $0x2a]]
    %v103 = vstv %s102
    %v104 = vmul.f32 %v103, %v93
    %v105 = vadd.f32 %v78, %v104
    %s106 = sld [smem:[#allocation2 + $0x2b]]
    %v107 = vstv %s106
    %v108 = vmul.f32 %v107, %v93
    %v109 = vadd.f32 %v82, %v108
    %s110 = sld [smem:[#allocation2 + $0x2]]
    %v111 = vstv %s110
    %v112 = vmul.f32 %v111, %v41
    %s113 = sld [smem:[#allocation2 + $0xe]]
    %v114 = vstv %s113
    %v115 = vmul.f32 %v114, %v43
    %v116 = vadd.f32 %v112, %v115
    %s117 = sld [smem:[#allocation2 + $0x1a]]
    %v118 = vstv %s117
    %v119 = vadd.f32 %v116, %v118
    %v120 = vmax.f32 %v119, 0.0
    %s121 = sld [smem:[#allocation2 + $0x2c]]
    %v122 = vstv %s121
    %v123 = vmul.f32 %v122, %v120
    %v124 = vadd.f32 %v97, %v123
    %s125 = sld [smem:[#allocation2 + $0x2d]]
    %v126 = vstv %s125
    %v127 = vmul.f32 %v126, %v120
    %v128 = vadd.f32 %v101, %v127
    %s129 = sld [smem:[#allocation2 + $0x2e]]
    %v130 = vstv %s129
    %v131 = vmul.f32 %v130, %v120
    %v132 = vadd.f32 %v105, %v131
    %s133 = sld [smem:[#allocation2 + $0x2f]]
    %v134 = vstv %s133
    %v135 = vmul.f32 %v134, %v120
    %v136 = vadd.f32 %v109, %v135
    %s137 = sld [smem:[#allocation2 + $0x3]]
    %v138 = vstv %s137
    %v139 = vmul.f32 %v138, %v41
    %s140 = sld [smem:[#allocation2 + $0xf]]
    %v141 = vstv %s140
    %v142 = vmul.f32 %v141, %v43
    %v143 = vadd.f32 %v139, %v142
    %s144 = sld [smem:[#allocation2 + $0x1b]]
    %v145 = vstv %s144
    %v146 = vadd.f32 %v143, %v145
    %v147 = vmax.f32 %v146, 0.0
    %s148 = sld [smem:[#allocation2 + $0x30]]
    %v149 = vstv %s148
    %v150 = vmul.f32 %v149, %v147
    %v151 = vadd.f32 %v124, %v150
    %s152 = sld [smem:[#allocation2 + $0x31]]
    %v153 = vstv %s152
    %v154 = vmul.f32 %v153, %v147
    %v155 = vadd.f32 %v128, %v154
    %s156 = sld [smem:[#allocation2 + $0x32]]
    %v157 = vstv %s156
    %v158 = vmul.f32 %v157, %v147
    %v159 = vadd.f32 %v132, %v158
    %s160 = sld [smem:[#allocation2 + $0x33]]
    %v161 = vstv %s160
    %v162 = vmul.f32 %v161, %v147
    %v163 = vadd.f32 %v136, %v162
    %s164 = sld [smem:[#allocation2 + $0x4]]
    %v165 = vstv %s164
    %v166 = vmul.f32 %v165, %v41
    %s167 = sld [smem:[#allocation2 + $0x10]]
    %v168 = vstv %s167
    %v169 = vmul.f32 %v168, %v43
    %v170 = vadd.f32 %v166, %v169
    %s171 = sld [smem:[#allocation2 + $0x1c]]
    %v172 = vstv %s171
    %v173 = vadd.f32 %v170, %v172
    %v174 = vmax.f32 %v173, 0.0
    %s175 = sld [smem:[#allocation2 + $0x34]]
    %v176 = vstv %s175
    %v177 = vmul.f32 %v176, %v174
    %v178 = vadd.f32 %v151, %v177
    %s179 = sld [smem:[#allocation2 + $0x35]]
    %v180 = vstv %s179
    %v181 = vmul.f32 %v180, %v174
    %v182 = vadd.f32 %v155, %v181
    %s183 = sld [smem:[#allocation2 + $0x36]]
    %v184 = vstv %s183
    %v185 = vmul.f32 %v184, %v174
    %v186 = vadd.f32 %v159, %v185
    %s187 = sld [smem:[#allocation2 + $0x37]]
    %v188 = vstv %s187
    %v189 = vmul.f32 %v188, %v174
    %v190 = vadd.f32 %v163, %v189
    %s191 = sld [smem:[#allocation2 + $0x5]]
    %v192 = vstv %s191
    %v193 = vmul.f32 %v192, %v41
    %s194 = sld [smem:[#allocation2 + $0x11]]
    %v195 = vstv %s194
    %v196 = vmul.f32 %v195, %v43
    %v197 = vadd.f32 %v193, %v196
    %s198 = sld [smem:[#allocation2 + $0x1d]]
    %v199 = vstv %s198
    %v200 = vadd.f32 %v197, %v199
    %v201 = vmax.f32 %v200, 0.0
    %s202 = sld [smem:[#allocation2 + $0x38]]
    %v203 = vstv %s202
    %v204 = vmul.f32 %v203, %v201
    %v205 = vadd.f32 %v178, %v204
    %s206 = sld [smem:[#allocation2 + $0x39]]
    %v207 = vstv %s206
    %v208 = vmul.f32 %v207, %v201
    %v209 = vadd.f32 %v182, %v208
    %s210 = sld [smem:[#allocation2 + $0x3a]]
    %v211 = vstv %s210
    %v212 = vmul.f32 %v211, %v201
    %v213 = vadd.f32 %v186, %v212
    %s214 = sld [smem:[#allocation2 + $0x3b]]
    %v215 = vstv %s214
    %v216 = vmul.f32 %v215, %v201
    %v217 = vadd.f32 %v190, %v216
    %s218 = sld [smem:[#allocation2 + $0x6]]
    %v219 = vstv %s218
    %v220 = vmul.f32 %v219, %v41
    %s221 = sld [smem:[#allocation2 + $0x12]]
    %v222 = vstv %s221
    %v223 = vmul.f32 %v222, %v43
    %v224 = vadd.f32 %v220, %v223
    %s225 = sld [smem:[#allocation2 + $0x1e]]
    %v226 = vstv %s225
    %v227 = vadd.f32 %v224, %v226
    %v228 = vmax.f32 %v227, 0.0
    %s229 = sld [smem:[#allocation2 + $0x3c]]
    %v230 = vstv %s229
    %v231 = vmul.f32 %v230, %v228
    %v232 = vadd.f32 %v205, %v231
    %s233 = sld [smem:[#allocation2 + $0x3d]]
    %v234 = vstv %s233
    %v235 = vmul.f32 %v234, %v228
    %v236 = vadd.f32 %v209, %v235
    %s237 = sld [smem:[#allocation2 + $0x3e]]
    %v238 = vstv %s237
    %v239 = vmul.f32 %v238, %v228
    %v240 = vadd.f32 %v213, %v239
    %s241 = sld [smem:[#allocation2 + $0x3f]]
    %v242 = vstv %s241
    %v243 = vmul.f32 %v242, %v228
    %v244 = vadd.f32 %v217, %v243
    %s245 = sld [smem:[#allocation2 + $0x7]]
    %v246 = vstv %s245
    %v247 = vmul.f32 %v246, %v41
    %s248 = sld [smem:[#allocation2 + $0x13]]
    %v249 = vstv %s248
    %v250 = vmul.f32 %v249, %v43
    %v251 = vadd.f32 %v247, %v250
    %s252 = sld [smem:[#allocation2 + $0x1f]]
    %v253 = vstv %s252
    %v254 = vadd.f32 %v251, %v253
    %v255 = vmax.f32 %v254, 0.0
    %s256 = sld [smem:[#allocation2 + $0x40]]
    %v257 = vstv %s256
    %v258 = vmul.f32 %v257, %v255
    %v259 = vadd.f32 %v232, %v258
    %s260 = sld [smem:[#allocation2 + $0x41]]
    %v261 = vstv %s260
    %v262 = vmul.f32 %v261, %v255
    %v263 = vadd.f32 %v236, %v262
    %s264 = sld [smem:[#allocation2 + $0x42]]
    %v265 = vstv %s264
    %v266 = vmul.f32 %v265, %v255
    %v267 = vadd.f32 %v240, %v266
    %s268 = sld [smem:[#allocation2 + $0x43]]
    %v269 = vstv %s268
    %v270 = vmul.f32 %v269, %v255
    %v271 = vadd.f32 %v244, %v270
    %s272 = sld [smem:[#allocation2 + $0x8]]
    %v273 = vstv %s272
    %v274 = vmul.f32 %v273, %v41
    %s275 = sld [smem:[#allocation2 + $0x14]]
    %v276 = vstv %s275
    %v277 = vmul.f32 %v276, %v43
    %v278 = vadd.f32 %v274, %v277
    %s279 = sld [smem:[#allocation2 + $0x20]]
    %v280 = vstv %s279
    %v281 = vadd.f32 %v278, %v280
    %v282 = vmax.f32 %v281, 0.0
    %s283 = sld [smem:[#allocation2 + $0x44]]
    %v284 = vstv %s283
    %v285 = vmul.f32 %v284, %v282
    %v286 = vadd.f32 %v259, %v285
    %s287 = sld [smem:[#allocation2 + $0x45]]
    %v288 = vstv %s287
    %v289 = vmul.f32 %v288, %v282
    %v290 = vadd.f32 %v263, %v289
    %s291 = sld [smem:[#allocation2 + $0x46]]
    %v292 = vstv %s291
    %v293 = vmul.f32 %v292, %v282
    %v294 = vadd.f32 %v267, %v293
    %s295 = sld [smem:[#allocation2 + $0x47]]
    %v296 = vstv %s295
    %v297 = vmul.f32 %v296, %v282
    %v298 = vadd.f32 %v271, %v297
    %s299 = sld [smem:[#allocation2 + $0x9]]
    %v300 = vstv %s299
    %v301 = vmul.f32 %v300, %v41
    %s302 = sld [smem:[#allocation2 + $0x15]]
    %v303 = vstv %s302
    %v304 = vmul.f32 %v303, %v43
    %v305 = vadd.f32 %v301, %v304
    %s306 = sld [smem:[#allocation2 + $0x21]]
    %v307 = vstv %s306
    %v308 = vadd.f32 %v305, %v307
    %v309 = vmax.f32 %v308, 0.0
    %s310 = sld [smem:[#allocation2 + $0x48]]
    %v311 = vstv %s310
    %v312 = vmul.f32 %v311, %v309
    %v313 = vadd.f32 %v286, %v312
    %s314 = sld [smem:[#allocation2 + $0x49]]
    %v315 = vstv %s314
    %v316 = vmul.f32 %v315, %v309
    %v317 = vadd.f32 %v290, %v316
    %s318 = sld [smem:[#allocation2 + $0x4a]]
    %v319 = vstv %s318
    %v320 = vmul.f32 %v319, %v309
    %v321 = vadd.f32 %v294, %v320
    %s322 = sld [smem:[#allocation2 + $0x4b]]
    %v323 = vstv %s322
    %v324 = vmul.f32 %v323, %v309
    %v325 = vadd.f32 %v298, %v324
    %s326 = sld [smem:[#allocation2 + $0xa]]
    %v327 = vstv %s326
    %v328 = vmul.f32 %v327, %v41
    %s329 = sld [smem:[#allocation2 + $0x16]]
    %v330 = vstv %s329
    %v331 = vmul.f32 %v330, %v43
    %v332 = vadd.f32 %v328, %v331
    %s333 = sld [smem:[#allocation2 + $0x22]]
    %v334 = vstv %s333
    %v335 = vadd.f32 %v332, %v334
    %v336 = vmax.f32 %v335, 0.0
    %s337 = sld [smem:[#allocation2 + $0x4c]]
    %v338 = vstv %s337
    %v339 = vmul.f32 %v338, %v336
    %v340 = vadd.f32 %v313, %v339
    %s341 = sld [smem:[#allocation2 + $0x4d]]
    %v342 = vstv %s341
    %v343 = vmul.f32 %v342, %v336
    %v344 = vadd.f32 %v317, %v343
    %s345 = sld [smem:[#allocation2 + $0x4e]]
    %v346 = vstv %s345
    %v347 = vmul.f32 %v346, %v336
    %v348 = vadd.f32 %v321, %v347
    %s349 = sld [smem:[#allocation2 + $0x4f]]
    %v350 = vstv %s349
    %v351 = vmul.f32 %v350, %v336
    %v352 = vadd.f32 %v325, %v351
    %s353 = sld [smem:[#allocation2 + $0xb]]
    %v354 = vstv %s353
    %v355 = vmul.f32 %v354, %v41
    %s356 = sld [smem:[#allocation2 + $0x17]]
    %v357 = vstv %s356
    %v358 = vmul.f32 %v357, %v43
    %v359 = vadd.f32 %v355, %v358
    %s360 = sld [smem:[#allocation2 + $0x23]]
    %v361 = vstv %s360
    %v362 = vadd.f32 %v359, %v361
    %v363 = vmax.f32 %v362, 0.0
    %s364 = sld [smem:[#allocation2 + $0x50]]
    %v365 = vstv %s364
    %v366 = vmul.f32 %v365, %v363
    %v367 = vadd.f32 %v340, %v366
    %s368 = sld [smem:[#allocation2 + $0x51]]
    %v369 = vstv %s368
    %v370 = vmul.f32 %v369, %v363
    %v371 = vadd.f32 %v344, %v370
    %s372 = sld [smem:[#allocation2 + $0x52]]
    %v373 = vstv %s372
    %v374 = vmul.f32 %v373, %v363
    %v375 = vadd.f32 %v348, %v374
    %s376 = sld [smem:[#allocation2 + $0x53]]
    %v377 = vstv %s376
    %v378 = vmul.f32 %v377, %v363
    %v379 = vadd.f32 %v352, %v378
    %v380 = vmax.f32 %v367, %v371
    %v381 = vmax.f32 %v375, %v379
    %v382 = vmax.f32 %v380, %v381
    %v383 = vsub.f32 %v367, %v382
    %v384 = vmul.f32 %v383, 1.442695
    %v385 = vpow.pop %v384
    %v386 = vsub.f32 %v371, %v382
    %v387 = vmul.f32 %v386, 1.442695
    %v388 = vpow.pop %v387
    %v389 = vsub.f32 %v375, %v382
    %v390 = vmul.f32 %v389, 1.442695
    %v391 = vpow.pop %v390
    %v392 = vsub.f32 %v379, %v382
    %v393 = vmul.f32 %v392, 1.442695
    %v394 = vpow.pop %v393
    %v395 = vadd.f32 %v385, %v388
    %v396 = vadd.f32 %v391, %v394
    %v397 = vadd.f32 %v395, %v396
    %v398 = vrcp.pop %v397
    %v399 = vmul.f32 %v397, %v398
    %v400 = vsub.f32 1.0, %v399
    %v401 = vmul.f32 %v398, %v400
    %v402 = vadd.f32 %v398, %v401
    %vm403 = vweird.f32 %v397
    %vm404 = vweird.f32 %v398
    %vm405 = vmor %vm403, %vm404
    %v406 = vsel %vm405, %v398, %v402
    %v407 = vand.u32 2147483647, %v397
    %vm408 = vcmp.eq.f32.partialorder %v407, 8.507059e+37
    %v409 = vand.u32 %v397, 2147483648
    %v410 = vor.u32 1.1754944e-38, %v409
    %v411 = vsel %vm408, %v410, %v406
    %v412 = vmul.f32 1.0, %v411
    %v413 = vmul.f32 %v385, %v412
    %414 = vst [vmem:[#allocation7] sm:$0x1] %v413
    %v415 = vmul.f32 %v388, %v412
    %s416 = scalar_lea.vmem [#allocation7], 1
    %417 = vst [vmem:[%s416] sm:$0x1] %v415
    %v418 = vmul.f32 %v391, %v412
    %s419 = scalar_lea.vmem [#allocation7], 2
    %420 = vst [vmem:[%s419] sm:$0x1] %v418
    %v421 = vmul.f32 %v394, %v412
    %s422 = scalar_lea.vmem [#allocation7], 3
    %423 = vst [vmem:[%s422] sm:$0x1] %v421
    // Predicated region
    $region18: #{tpu_custom_call.1} parent=1 // pred_check
      _
    $region19: #{tpu_custom_call.1} parent=1 // pred_check_branch
      %425 = sbr.rel (0) target = $region21
    $region20: #{tpu_custom_call.1} parent=1 // pred_region
      %427 = vsyncadd [#allocation4], 0
      %s428 = sshll.u32 [#allocation7], 4
      %s429 = int_to_ptr.vmem [resolvable:$true] %s428
      %s430 = sshll.u32 %s2, 4
      %s431 = int_to_ptr.hbm [resolvable:$true] %s430
      %436 = dma.vmem_to_hbm [thread:$0]  %s429, 64, %s431, [#allocation4], 16, 16, 1
    $region21: #{tpu_custom_call.1} parent=1 // pred_fallthru
      _
    // Predicated region
    $region22: #{tpu_custom_call.1} parent=1 // pred_check
      _
    $region23: #{tpu_custom_call.1} parent=1 // pred_check_branch
      %438 = sbr.rel (0) target = $region25
    $region24: #{tpu_custom_call.1} parent=1 // pred_region
      %440 = dma.done [#allocation4], 64
    $region25: #{tpu_custom_call.1} parent=1 // pred_fallthru
      _
    %441 = vsyncpa [#allocation3], 1
    %442 = vsyncpa [#allocation4], 1
    %443 = vsyncpa [#allocation5], 1

</llo_original>
